<compile_context>
chip_gen: v7x
topology: tpu7x:2x2x1
jax: 0.10.0
libtpu: 0.0.40
codegen_flags: <defaults>
</compile_context>

<pallas_src>
import jax
import jax.numpy as jnp
from jax.experimental import pallas as pl
from jax.experimental.pallas import tpu as pltpu


# ---------------------------------------------------------------------------
# Generation-aware scoped-VMEM budget
# ---------------------------------------------------------------------------
def _vmem_limit_bytes():
    """<=48 MiB on v7x (64 MiB physical VMEM per TC), 64 MiB on v5e/v6e
    (128 MiB).  Falls back to the conservative v7x value if the hardware
    query is unavailable."""
    try:
        physical = int(pltpu.get_tpu_info().vmem_capacity_bytes)
    except Exception:
        physical = 64 * 1024 * 1024
    if physical <= 64 * 1024 * 1024:
        return 48 * 1024 * 1024
    return 64 * 1024 * 1024


# ---------------------------------------------------------------------------
# Fused linear-combine Pallas kernel:  out = sum_k  coeff_k * slab_k
# (coefficients are real scalars applied identically to the interleaved
#  real/imag planes, exactly what complex_scale does)
# ---------------------------------------------------------------------------
def _make_combine_kernel(coeffs):
    coeffs = tuple(float(c) for c in coeffs)

    def kernel(*refs):
        in_refs, o_ref = refs[:-1], refs[-1]
        acc = coeffs[0] * in_refs[0][...]
        for c, r in zip(coeffs[1:], in_refs[1:]):
            acc = acc + c * r[...]
        o_ref[...] = acc

    return kernel


def fused_linear_combine(terms, *, max_block_bytes=4 << 20):
    """terms: list of (array_2d, python_float_coeff) on identical (M, N) f32
    slabs (aliased operands should already be merged).  Pure HBM streaming:
    one pass over each distinct input slab plus one output write."""
    arrays = [a for a, _ in terms]
    coeffs = [c for _, c in terms]
    M, N = arrays[0].shape
    itemsize = arrays[0].dtype.itemsize
    n_in = len(arrays)

    vmem_limit = _vmem_limit_bytes()
    # Live pipeline footprint = (n_in inputs + 1 output) x 2 buffers x block.
    block_budget = max(128 * 8 * itemsize,
                       min(max_block_bytes, vmem_limit // (2 * (n_in + 1))))

    # Sublane-axis tile: full extent when modest (always legal), else a
    # multiple of 8 so stores stay unmasked except on the last partial block.
    tile_m = M if M <= 1024 else 1024

    # Lane-axis tile: multiple of 128 (an exact divisor of N when one exists,
    # avoiding a padded partial last column block), capped by block_budget.
    max_tile_n = max(128, (block_budget // (itemsize * tile_m) // 128) * 128)

    def _pick_tile_n(upper):
        k_max = max(1, min(upper, max_tile_n) // 128)
        for k in range(k_max, 0, -1):
            if N % (k * 128) == 0:
                return k * 128
        return k_max * 128

    if N <= 128 or N <= max_tile_n:
        tile_n = N                      # full extent: always a legal block
    else:
        tile_n = _pick_tile_n(N)

    grid_m = pl.cdiv(M, tile_m)
    grid_n = pl.cdiv(N, tile_n)

    # v7x has two TensorCores; guarantee >= 2 grid programs on a "parallel"
    # axis so neither core sits idle on this bandwidth-bound kernel.
    if grid_m * grid_n < 2 and N >= 256:
        tile_n = _pick_tile_n(N // 2)
        grid_n = pl.cdiv(N, tile_n)

    grid = (grid_m, grid_n)
    spec = pl.BlockSpec((tile_m, tile_n), lambda i, j: (i, j))

    cost = pl.CostEstimate(
        flops=(2 * n_in - 1) * M * N,
        transcendentals=0,
        bytes_accessed=(n_in + 1) * M * N * itemsize)

    return pl.pallas_call(
        _make_combine_kernel(coeffs),
        out_shape=jax.ShapeDtypeStruct((M, N), arrays[0].dtype),
        grid=grid,
        in_specs=[spec] * n_in,
        out_specs=spec,
        compiler_params=pltpu.CompilerParams(
            dimension_semantics=("parallel", "parallel"),
            vmem_limit_bytes=vmem_limit),
        cost_estimate=cost,
    )(*arrays)


# ---------------------------------------------------------------------------
# Patch extraction / recovery (JAX glue, only used when D is NOT the identity
# stand-in; with the stub the round trip is skipped entirely in forward()).
# The trailing real/imag dim rides along so the complex pair stays interleaved.
# ---------------------------------------------------------------------------
def extract_patches(x, patch_size):
    B, T, H, W, C = x.shape
    ph, pw = patch_size
    gx = (H + ph - 1) // ph
    gy = (W + pw - 1) // pw
    xp = jnp.pad(x, ((0, 0), (0, 0), (0, gx * ph - H), (0, gy * pw - W), (0, 0)))
    patches = xp.reshape(B, T, gx, ph, gy, pw, C).transpose(0, 1, 2, 4, 3, 5, 6)
    return patches.reshape(B, T, gx * gy, ph, pw, C), (gx, gy)


def recover_patches(patches, grid, image_size):
    B, T, N, ph, pw, C = patches.shape
    gx, gy = grid
    assert N == gx * gy
    x = patches.reshape(B, T, gx, gy, ph, pw, C).transpose(0, 1, 2, 4, 3, 5, 6)
    x = x.reshape(B, T, gx * ph, gy * pw, C)
    return x[:, :, :image_size[0], :image_size[1], :]


# ---------------------------------------------------------------------------
# Module wrapper (deterministic params from __init__ defaults)
# ---------------------------------------------------------------------------
class ComplexAttentionLSNet:
    # TODO(synk): ComplexUNet2Dt (self.R) and LNetXYTBatch (self.D) have no
    # provided definition in the source; identity stand-ins are used.
    _R_IS_IDENTITY_STUB = True
    _D_IS_IDENTITY_STUB = True

    def __init__(self, num_patches=80, image_size=(192, 156),
                 patch_size=(32, 32), time_size=25):
        self.image_size = image_size
        self.patch_size = patch_size
        self.num_patches = num_patches
        self.time_size = time_size
        # Scalar(init=0.1, train_scale=1.0) and Scalar(init=0.5, train_scale=1.0)
        self.tau_weight = 0.1
        self.p_weight_weight = 0.5

    def R(self, x):          # ComplexUNet2Dt stand-in (identity)
        return x

    def D(self, patches):    # LNetXYTBatch stand-in (identity)
        return patches

    def forward(self, x, num_iter=5):
        # x: (B, T, H, W, 2), last dim = (real, imag)
        x = x.astype(jnp.float32)
        B, T, H, W, C = x.shape
        assert C == 2
        assert (H, W) == tuple(self.image_size), \
            "p and q must share the image size for the complex blend"

        # den = R(x.unsqueeze(1)).squeeze(1); identity stand-in => den aliases x.
        d = x if self._R_IS_IDENTITY_STUB else self.R(x)

        # q = recover(D(extract(x))).  With the identity stand-in the pad ->
        # unfold -> permute -> crop round trip is exactly the identity, so we
        # alias q to x and avoid two full-slab HBM passes.
        if self._D_IS_IDENTITY_STUB:
            q = x
        else:
            patches, grid = extract_patches(x, self.patch_size)
            pb = jnp.transpose(patches, (0, 2, 1, 3, 4, 5))     # (B,N,T,ph,pw,2)
            Bp, Np = pb.shape[0], pb.shape[1]
            pb = pb.reshape(Bp * Np, T, *pb.shape[3:])
            max_batch = 100
            chunks = [self.D(pb[i:i + max_batch])
                      for i in range(0, Bp * Np, max_batch)]
            qp = jnp.concatenate(chunks, axis=0) if len(chunks) > 1 else chunks[0]
            qp = qp.reshape(Bp, Np, T, *qp.shape[2:])
            qp = jnp.transpose(qp, (0, 2, 1, 3, 4, 5))           # (B,T,N,ph,pw,2)
            q = recover_patches(qp, grid, self.image_size)

        # out = pw*(x - tau*den/num_iter) + (1-pw)*q  =  c_x*x + c_d*d + c_q*q
        pw, tau = self.p_weight_weight, self.tau_weight
        c_x, c_d, c_q = pw, -pw * tau / num_iter, 1.0 - pw

        # Dedupe aliased operands so each distinct slab is streamed once.
        terms = []
        for arr, coef in ((x, c_x), (d, c_d), (q, c_q)):
            for idx, (a, c) in enumerate(terms):
                if a is arr:
                    terms[idx] = (a, c + coef)
                    break
            else:
                terms.append((arr, coef))

        M, Nflat = B * T, H * W * 2      # zero-copy views of contiguous data
        slabs = [(a.reshape(M, Nflat), c) for a, c in terms]
        out = fused_linear_combine(slabs)
        return out.reshape(B, T, H, W, 2)


# ---------------------------------------------------------------------------
# Main
# ---------------------------------------------------------------------------
if __name__ == "__main__":
    key = jax.random.PRNGKey(0)
    B, T, H, W = 2, 4, 16, 16           # small shapes consistent with the module
    patch_size = (8, 8)
    num_iter = 5

    x = jax.random.normal(key, (B, T, H, W, 2), dtype=jnp.float32)

    net = ComplexAttentionLSNet(num_patches=4, image_size=(H, W),
                                patch_size=patch_size, time_size=T)
    out = jax.block_until_ready(net.forward(x, num_iter=num_iter))
    assert out.shape == (B, T, H, W, 2)

    # Pure-JAX reference (identity R/D stand-ins: den == x and q == x).
    tau, pw = 0.1, 0.5
    p = x - x * tau / num_iter
    ref = pw * p + (1.0 - pw) * x
    assert jnp.allclose(out, ref, atol=1e-5, rtol=1e-5)

    # Also exercise the general 3-operand kernel path (used once real R / D
    # kernels produce distinct d and q slabs).
    k1, k2, k3 = jax.random.split(key, 3)
    a = jax.random.normal(k1, (8, 512), jnp.float32)
    b = jax.random.normal(k2, (8, 512), jnp.float32)
    c = jax.random.normal(k3, (8, 512), jnp.float32)
    got = jax.block_until_ready(
        fused_linear_combine([(a, 0.5), (b, -0.01), (c, 0.5)]))
    want = 0.5 * a - 0.01 * b + 0.5 * c
    assert jnp.allclose(got, want, atol=1e-5, rtol=1e-5)

    print("KERNEL_OK")
</pallas_src>

<mosaic_0001>
module attributes {stable_mosaic.version = 11 : i64} {
  func.func @kernel(%arg0: i32, %arg1: i32, %arg2: memref<8x256xf32, #tpu.memory_space<vmem>>, %arg3: memref<8x256xf32, #tpu.memory_space<vmem>>) attributes {dimension_semantics = [#tpu.dimension_semantics<parallel>, #tpu.dimension_semantics<parallel>], iteration_bounds = array<i64: 1, 2>, scalar_prefetch = 0 : i64, scratch_operands = 0 : i64, tpu.core_type = #tpu.core_type<tc>, window_params = [{transform_indices = @transform_0, window_bounds = array<i64: 8, 256>}, {transform_indices = @transform_1, window_bounds = array<i64: 8, 256>}]} {
    %c0 = arith.constant 0 : index
    %c0_0 = arith.constant 0 : index
    %0 = vector.load %arg2[%c0, %c0_0] : memref<8x256xf32, #tpu.memory_space<vmem>>, vector<8x256xf32>
    %cst = arith.constant 9.900000e-01 : f32
    %1 = vector.broadcast %cst : f32 to vector<8x256xf32>
    %2 = arith.mulf %1, %0 : vector<8x256xf32>
    %c0_1 = arith.constant 0 : index
    %c0_2 = arith.constant 0 : index
    %3 = vector.load %arg3[%c0_1, %c0_2] : memref<8x256xf32, #tpu.memory_space<vmem>>, vector<8x256xf32>
    tpu.vector_store %arg3[%c0_1, %c0_2], %2 {strides = array<i32>} : memref<8x256xf32, #tpu.memory_space<vmem>>, vector<8x256xf32>,
    return
  }
  func.func @transform_0(%arg0: i32, %arg1: i32) -> (i32, i32) {
    %c0_i32 = arith.constant 0 : i32
    return %arg0, %arg1 : i32, i32
  }
  func.func @transform_1(%arg0: i32, %arg1: i32) -> (i32, i32) {
    %c0_i32 = arith.constant 0 : i32
    return %arg0, %arg1 : i32, i32
  }
}

</mosaic_0001>

<llo_original>
// kernel: tpu_custom_call.1
$region0: #{tpu_custom_call.1}
  #allocation0 [shape = 'u32[]', space=smem, size = 0x4, offset = 0x4, fixed_abs, tag = 'smem constant byte address 0x4 - core index']
  #allocation1 [shape = 'u32[144,128]{1,0:T(1,128)}', space=vmem, size = 0x12000, scoped, tag = 'internal scratch']
  %s0 = inlined_call_operand.hbm [shape: f32[8,512], index: 0, kind: input, shape index: {}]
  %s1 = inlined_call_operand.hbm [shape: f32[8,512], index: 1, kind: output, shape index: {}]
  %s2 = sld [smem:[#allocation0]]
  $region41: #{tpu_custom_call.1} parent=0
    _
  %s4 = ssub.s32 1, %s2
  %s5 = scalar_select 0, %s4, %s2
  $region1: #{tpu_custom_call.1} parent=0
    #allocation2 [shape = 'u8[16384]{0}', space=vmem, size = 0x4000, scoped, tag = 'input window, operand 0']
    #allocation3 [shape = 's32[2]{0}', space=sflag, size = 0x8, scoped, tag = 'scoped memory for tpu_custom_call.1']
    #allocation4 [shape = 's32[2]{0}', space=sflag, size = 0x8, scoped, tag = 'scoped memory for tpu_custom_call.1']
    #allocation5 [shape = 'u8[16384]{0}', space=vmem, size = 0x4000, scoped, tag = 'output window, operand 0']
    %6 = vsyncpa [#allocation3], 0
    %s7 = scalar_lea.sflag [#allocation3], 1
    %8 = vsyncpa %s7, 0
    %9 = vsyncpa [#allocation4], 0
    %s10 = scalar_lea.sflag [#allocation4], 1
    %11 = vsyncpa %s10, 0
    loop: start=0, step=1, limit=4
    $region2: #{tpu_custom_call.1} parent=1 // loop_pre_header
      _
    $region3: #{tpu_custom_call.1} parent=1 // loop_header
      %s13 = sphi 0, %s17
      %p14 = scmp.ge.s32.totalorder %s13, 4
      %s20 = sphi 0, %s32
      %s21 = sphi 0, %s28
      %s22 = sphi 0, %s20
      %s23 = sphi 0, %s21
      %s24 = sphi 0, %s22
      %s25 = sphi 0, %s23
      %s37 = sphi 0, %s39
      %s40 = sphi 0, %s37
      %s41 = sphi 0, %s40
      %s57 = sphi 0, %s41
      %s65 = sphi 0, %s67
      %s68 = sphi 0, %s65
      %s69 = sphi 0, %s68
      %s85 = sphi 0, %s69
    $region4: #{tpu_custom_call.1} parent=1 // loop_header_branch
      %16 = sbr.rel (%p14) target = $region8
    $region5: #{tpu_custom_call.1} parent=1 // loop_body
      %s18 = ssub.s32 %s13, 1
      %s19 = ssub.s32 %s13, 2
      %s26 = sadd.s32 1, %s21
      %p27 = scmp.ge.s32.totalorder %s26, 2
      %s28 = scalar_select %p27, 0, %s26
      %s29 = sadd.s32 1, %s20
      %s30 = scalar_select %p27, %s29, %s20
      %p31 = scmp.ge.s32.totalorder %s30, 1
      %s32 = scalar_select %p31, 0, %s30
      %s33 = ssub.s32 %s20, %s32
      %s34 = ssub.s32 %s21, %s28
      %s35 = sor.u32 %s33, %s34
      %p36 = scmp.eq.s32.totalorder %s35, 0
      %s38 = sadd.s32 %s37, 1
      %s39 = scalar_select %p36, %s37, %s38
      %p42 = pneg %p36
      %p43 = scmp.eq.s32.totalorder %s13, 1
      %p44 = por %p42, %p43
      %p45 = scmp.ne.s32.totalorder %s37, %s40
      %p46 = scmp.eq.s32.totalorder %s13, 0
      %p47 = por %p45, %p46
      %p48 = scmp.ne.s32.totalorder %s37, %s40
      %p49 = scmp.eq.s32.totalorder %s18, 1
      %p50 = por %p48, %p49
      %p51 = scmp.ne.s32.totalorder %s40, %s41
      %p52 = scmp.eq.s32.totalorder %s18, 0
      %p53 = por %p51, %p52
      %p54 = scmp.ne.s32.totalorder %s40, %s41
      %p55 = scmp.eq.s32.totalorder %s19, 1
      %p56 = por %p54, %p55
      %p58 = scmp.ne.s32.totalorder %s41, %s57
      %p59 = scmp.eq.s32.totalorder %s19, 0
      %p60 = por %p58, %p59
      %s61 = ssub.s32 %s20, %s32
      %s62 = ssub.s32 %s21, %s28
      %s63 = sor.u32 %s61, %s62
      %p64 = scmp.eq.s32.totalorder %s63, 0
      %s66 = sadd.s32 %s65, 1
      %s67 = scalar_select %p64, %s65, %s66
      %p70 = pneg %p64
      %p71 = scmp.eq.s32.totalorder %s13, 1
      %p72 = por %p70, %p71
      %p73 = scmp.ne.s32.totalorder %s65, %s68
      %p74 = scmp.eq.s32.totalorder %s13, 0
      %p75 = por %p73, %p74
      %p76 = scmp.ne.s32.totalorder %s65, %s68
      %p77 = scmp.eq.s32.totalorder %s18, 1
      %p78 = por %p76, %p77
      %p79 = scmp.ne.s32.totalorder %s68, %s69
      %p80 = scmp.eq.s32.totalorder %s18, 0
      %p81 = por %p79, %p80
      %p82 = scmp.ne.s32.totalorder %s68, %s69
      %p83 = scmp.eq.s32.totalorder %s19, 1
      %p84 = por %p82, %p83
      %p86 = scmp.ne.s32.totalorder %s69, %s85
      %p87 = scmp.eq.s32.totalorder %s19, 0
      %p88 = por %p86, %p87
      %p89 = scmp.le.s32.totalorder 1, %s13
      %p90 = scmp.lt.s32.totalorder %s13, 3
      %p91 = pnand %p89, %p90
      %p92 = pneg %p91
      // Predicated region
      $region9: #{tpu_custom_call.1} parent=5 // pred_check
        _
      $region10: #{tpu_custom_call.1} parent=5 // pred_check_branch
        %94 = sbr.rel (%p91) target = $region12
      $region11: #{tpu_custom_call.1} parent=5 // pred_region
        %s95 = ssub.s32 %s13, 1
      $region12: #{tpu_custom_call.1} parent=5 // pred_fallthru
        _
      %p96 = scmp.lt.s32.totalorder %s13, 2
      // Predicated region
      $region13: #{tpu_custom_call.1} parent=5 // pred_check
        %p97 = pneg %p96
      $region14: #{tpu_custom_call.1} parent=5 // pred_check_branch
        %99 = sbr.rel (%p97) target = $region16
      $region15: #{tpu_custom_call.1} parent=5 // pred_region
        // Predicated region
        $region17: #{tpu_custom_call.1} parent=15 // pred_check
          %p100 = pneg %p47
        $region18: #{tpu_custom_call.1} parent=15 // pred_check_branch
          %102 = sbr.rel (%p100) target = $region20
        $region19: #{tpu_custom_call.1} parent=15 // pred_region
          %s103 = sand.u32 %s37, 1
          %s104 = scalar_lea.sflag [#allocation3], %s103
          %s105 = sand.u32 %s37, 1
          %s106 = smul.addr %s105, 16
          %s107 = scalar_lea.vmem [#allocation2], %s106
          %s108 = smul.u32 2, %s21
          %s110 = ssub.s32 256, 256
          %111 = vsyncadd %s104, %s110
          %s112 = smul.addr %s20, 4
          %s113 = sadd.s32 %s108, %s112
          %s114 = smul.addr %s113, 128
          %s115 = scalar_lea.hbm %s0, %s114
          %s117 = sshll.u32 %s107, 4
          %s118 = int_to_ptr.vmem [resolvable:$true] %s117
          %120 = dma.hbm_to_vmem [thread:$0]  %s115, 256, %s118, %s104
        $region20: #{tpu_custom_call.1} parent=15 // pred_fallthru
          _
      $region16: #{tpu_custom_call.1} parent=5 // pred_fallthru
        _
      %p121 = scmp.le.s32.totalorder 1, %s13
      %p122 = scmp.lt.s32.totalorder %s13, 3
      %p123 = pnand %p121, %p122
      %p124 = pneg %p123
      // Predicated region
      $region21: #{tpu_custom_call.1} parent=5 // pred_check
        _
      $region22: #{tpu_custom_call.1} parent=5 // pred_check_branch
        %126 = sbr.rel (%p123) target = $region24
      $region23: #{tpu_custom_call.1} parent=5 // pred_region
        %s127 = ssub.s32 %s13, 1
        %s128 = sand.u32 %s40, 1
        %s129 = scalar_lea.sflag [#allocation3], %s128
        %s130 = sand.u32 %s40, 1
        %s131 = smul.addr %s130, 16
        %s132 = scalar_lea.vmem [#allocation2], %s131
        // Predicated region
        $region25: #{tpu_custom_call.1} parent=23 // pred_check
          %p133 = pneg %p53
        $region26: #{tpu_custom_call.1} parent=23 // pred_check_branch
          %135 = sbr.rel (%p133) target = $region28
        $region27: #{tpu_custom_call.1} parent=23 // pred_region
          %136 = dma.done %s129, 256
        $region28: #{tpu_custom_call.1} parent=23 // pred_fallthru
          _
        %s137 = sand.u32 %s40, 1
        %s138 = scalar_lea.sflag [#allocation3], %s137
        %s139 = sand.u32 %s40, 1
        %s140 = smul.addr %s139, 16
        %s141 = scalar_lea.vmem [#allocation2], %s140
        %p142 = pneg %p53
        %p143 = pneg %p50
        %p144 = pneg %p81
        %p145 = pneg %p78
        %s146 = sand.u32 %s68, 1
        %s147 = scalar_lea.sflag [#allocation4], %s146
        %s148 = sand.u32 %s68, 1
        %s149 = smul.addr %s148, 16
        %s150 = scalar_lea.vmem [#allocation5], %s149
        %s151 = smul.u32 2, %s23
        %s152 = smul.u32 2, %s23
        %v153 = vld [vmem:[%s132] sm:$0xff]
        %v154 = vld [vmem:[%s132 + $0x8] sm:$0xff]
        %v155 = vmul.f32 %v153, 0.99
        %v156 = vmul.f32 %v154, 0.99
        %157 = vst [vmem:[%s150] sm:$0xff] %v155
        %158 = vst [vmem:[%s150 + $0x8] sm:$0xff] %v156
        %s159 = sand.u32 %s68, 1
        %s160 = scalar_lea.sflag [#allocation4], %s159
        %s161 = sand.u32 %s68, 1
        %s162 = smul.addr %s161, 16
        %s163 = scalar_lea.vmem [#allocation5], %s162
        // Predicated region
        $region29: #{tpu_custom_call.1} parent=23 // pred_check
          %p164 = pneg %p78
        $region30: #{tpu_custom_call.1} parent=23 // pred_check_branch
          %166 = sbr.rel (%p164) target = $region32
        $region31: #{tpu_custom_call.1} parent=23 // pred_region
          %s167 = smul.u32 2, %s23
          %s169 = ssub.s32 256, 256
          %170 = vsyncadd %s160, %s169
          %s171 = smul.addr %s22, 4
          %s172 = sadd.s32 %s167, %s171
          %s173 = smul.addr %s172, 128
          %s174 = scalar_lea.hbm %s1, %s173
          %s176 = sshll.u32 %s163, 4
          %s177 = int_to_ptr.vmem [resolvable:$true] %s176
          %179 = dma.vmem_to_hbm [thread:$0]  %s177, 256, %s174, %s160
        $region32: #{tpu_custom_call.1} parent=23 // pred_fallthru
          _
      $region24: #{tpu_custom_call.1} parent=5 // pred_fallthru
        _
      %p180 = scmp.le.s32.totalorder 2, %s13
      // Predicated region
      $region33: #{tpu_custom_call.1} parent=5 // pred_check
        %p181 = pneg %p180
      $region34: #{tpu_custom_call.1} parent=5 // pred_check_branch
        %183 = sbr.rel (%p181) target = $region36
      $region35: #{tpu_custom_call.1} parent=5 // pred_region
        %s184 = ssub.s32 %s13, 2
        // Predicated region
        $region37: #{tpu_custom_call.1} parent=35 // pred_check
          %p185 = pneg %p84
        $region38: #{tpu_custom_call.1} parent=35 // pred_check_branch
          %187 = sbr.rel (%p185) target = $region40
        $region39: #{tpu_custom_call.1} parent=35 // pred_region
          %s188 = sand.u32 %s69, 1
          %s189 = scalar_lea.sflag [#allocation4], %s188
          %s190 = sand.u32 %s69, 1
          %s191 = smul.addr %s190, 16
          %s192 = scalar_lea.vmem [#allocation5], %s191
          %193 = dma.done %s189, 256
        $region40: #{tpu_custom_call.1} parent=35 // pred_fallthru
          _
      $region36: #{tpu_custom_call.1} parent=5 // pred_fallthru
        _
    $region6: #{tpu_custom_call.1} parent=1 // loop_footer
      %s17 = sadd.s32 1, %s13
    $region7: #{tpu_custom_call.1} parent=1 // loop_footer_branch
      %12 = sbr.rel target = $region3
    $region8: #{tpu_custom_call.1} parent=1 // loop_exit
      _
    %194 = vsyncpa [#allocation3], 1
    %s195 = scalar_lea.sflag [#allocation3], 1
    %196 = vsyncpa %s195, 1
    %197 = vsyncpa [#allocation4], 1
    %s198 = scalar_lea.sflag [#allocation4], 1
    %199 = vsyncpa %s198, 1

</llo_original>
